<compile_context>
chip_gen: v7x
topology: tpu7x:2x2x1
jax: 0.10.0
libtpu: 0.0.40
codegen_flags: <defaults>
</compile_context>

<pallas_src>
import functools

import jax
import jax.numpy as jnp
from jax.experimental import pallas as pl
from jax.experimental.pallas import tpu as pltpu

HID = 16                        # hidden width of lin1 / added
LANE = 128                      # TPU lane width
CHUNK = 8192                    # in-kernel compute chunk (lanes); bounds temporaries
X_TILE_VMEM_BUDGET = 32 << 20   # budget for the double-buffered x tile in VMEM


def mlp_kernel(x_ref, w1_ref, b1_ref, w2_ref, b2_ref, w3_ref, b3_ref, o_ref,
               *, chunk):
    # Tiny weights: load once per grid step.
    w1 = w1_ref[...]            # (16, F)
    b1 = b1_ref[...]            # (16, 1)
    w2 = w2_ref[...]            # (16, 16)
    b2 = b2_ref[...]            # (16, 1)
    w3 = w3_ref[...]            # (1, 16)
    b3 = b3_ref[...]            # (1, 1)

    tb = x_ref.shape[0]
    # Static lane-chunking of the big (tb, F) DMA tile: keeps the (16, chunk)
    # f32 temporaries small so VMEM stays dominated by the pipelined x stream.
    # All offsets/sizes are multiples of 128 (tb and chunk are lane multiples).
    for lo in range(0, tb, chunk):
        hi = min(lo + chunk, tb)                 # static slice bounds
        xs = x_ref[lo:hi, :]                     # (c, F) view of the x tile

        # lin1 + tanh: contract the shared F axis (w1 . xs^T) -> (16, c), lane-dense.
        z1 = jax.lax.dot_general(
            w1, xs, (((1,), (1,)), ((), ())),
            preferred_element_type=jnp.float32) + b1
        a1 = jnp.tanh(z1)

        # added + relu: (16, 16) @ (16, c) -> (16, c)
        h = jnp.maximum(
            jnp.dot(w2, a1, preferred_element_type=jnp.float32) + b2, 0.0)

        # lin2 + sigmoid: (1, 16) @ (16, c) -> (1, c).  sigmoid written as
        # 0.5*tanh(0.5*z)+0.5 = a single EUP op instead of exp + divide
        # (matters if v7x ends up EUP-bound at 3.2 TB/s).
        z2 = jnp.dot(w3, h, preferred_element_type=jnp.float32) + b3
        o_ref[:, lo:hi] = 0.5 * jnp.tanh(0.5 * z2) + 0.5


def _pick_tb(B, f_pad):
    """Batch tile: lane multiple, VMEM-bounded, >= 2 grid steps when possible."""
    b_lanes = pl.cdiv(B, LANE) * LANE
    # Cap so the double-buffered, lane-padded (tb, F) x tile stays within budget
    # (leaves headroom for temporaries/output inside v7x's 64 MiB physical VMEM).
    tb_cap = max(LANE, (X_TILE_VMEM_BUDGET // (2 * 4 * f_pad)) // LANE * LANE)
    if b_lanes > tb_cap:
        return tb_cap                            # large B -> >= 2 grid steps anyway
    if b_lanes >= 2 * LANE:
        # Small/medium B: still split into >= 2 steps so ("parallel",) can use
        # both v7x TensorCores (negligible cost on single-core v5e/v6e).
        return pl.cdiv(pl.cdiv(B, 2), LANE) * LANE
    return b_lanes


def mlp_forward(x, params, *, tb=None):
    """x: (B, F) float32.  params: PyTorch-layout weights (out, in), biases (out, 1)."""
    B, F = x.shape
    f_pad = pl.cdiv(F, LANE) * LANE
    if tb is None:
        tb = _pick_tb(B, f_pad)
    tb = max(LANE, (tb // LANE) * LANE)          # enforce lane-multiple tile
    chunk = min(CHUNK, tb)
    grid = (pl.cdiv(B, tb),)                     # ragged final block is masked by Pallas

    w1, b1 = params["w1"], params["b1"]          # (16, F), (16, 1)
    w2, b2 = params["w2"], params["b2"]          # (16, 16), (16, 1)
    w3, b3 = params["w3"], params["b3"]          # (1, 16),  (1, 1)

    # VMEM sizing (review item): double-buffered x tile (lane-padded to 128),
    # double-buffered (1, tb) output, chunk-local (16, chunk) temporaries, plus
    # slack for weights / compiler scratch.  Capped below v7x's 64 MiB physical.
    x_tile_bytes = 2 * tb * f_pad * 4
    out_bytes = 2 * tb * 32
    tmp_bytes = 8 * HID * chunk * 4
    vmem_limit = min(56 << 20,
                     max(32 << 20, x_tile_bytes + out_bytes + tmp_bytes + (8 << 20)))

    weight_bytes = 4 * (w1.size + b1.size + w2.size + b2.size + w3.size + b3.size)
    cost = pl.CostEstimate(
        flops=2 * B * (F * HID + HID * HID + HID),
        transcendentals=B * (HID + 1),           # 16 tanh + 1 sigmoid per row
        bytes_accessed=4 * (B * F + B) + weight_bytes,
    )

    out = pl.pallas_call(
        functools.partial(mlp_kernel, chunk=chunk),
        out_shape=jax.ShapeDtypeStruct((1, B), jnp.float32),
        grid_spec=pltpu.PrefetchScalarGridSpec(
            num_scalar_prefetch=0,
            grid=grid,
            in_specs=[
                pl.BlockSpec((tb, F), lambda i: (i, 0)),      # x stream (pipelined)
                pl.BlockSpec((HID, F), lambda i: (0, 0)),     # w1 (resident)
                pl.BlockSpec((HID, 1), lambda i: (0, 0)),     # b1
                pl.BlockSpec((HID, HID), lambda i: (0, 0)),   # w2
                pl.BlockSpec((HID, 1), lambda i: (0, 0)),     # b2
                pl.BlockSpec((1, HID), lambda i: (0, 0)),     # w3
                pl.BlockSpec((1, 1), lambda i: (0, 0)),       # b3
            ],
            out_specs=pl.BlockSpec((1, tb), lambda i: (0, i)),  # lane-dense output
        ),
        compiler_params=pltpu.CompilerParams(
            dimension_semantics=("parallel",),   # batch tiles are independent
            vmem_limit_bytes=int(vmem_limit),
        ),
        cost_estimate=cost,
    )(x, w1, b1, w2, b2, w3, b3)

    # Kernel emits a lane-dense (1, B) slab.  Consumers that can accept that
    # (or (B,)) should take `out` directly; the reshape below only exists to
    # match the PyTorch (B, 1) output layout.
    return out.reshape(B, 1)


def init_params(key, n_features):
    """Deterministic init matching nn.Linear shapes (PyTorch-native (out, in))."""
    ks = jax.random.split(key, 6)

    def linear(kw, kb, fan_in, fan_out):
        bound = 1.0 / jnp.sqrt(fan_in)
        w = jax.random.uniform(kw, (fan_out, fan_in), jnp.float32, -bound, bound)
        b = jax.random.uniform(kb, (fan_out, 1), jnp.float32, -bound, bound)
        return w, b

    w1, b1 = linear(ks[0], ks[1], n_features, HID)
    w2, b2 = linear(ks[2], ks[3], HID, HID)
    w3, b3 = linear(ks[4], ks[5], HID, 1)
    return {"w1": w1, "b1": b1, "w2": w2, "b2": b2, "w3": w3, "b3": b3}


def mlp_reference(x, p):
    a1 = jnp.tanh(x @ p["w1"].T + p["b1"].T)
    h = jnp.maximum(a1 @ p["w2"].T + p["b2"].T, 0.0)
    return jax.nn.sigmoid(h @ p["w3"].T + p["b3"].T)


if __name__ == "__main__":
    # Small synthetic shapes; B is intentionally not a tile multiple to
    # exercise the ragged-final-block path, F = n_features.
    B, F = 1000, 8

    key = jax.random.PRNGKey(0)
    k_x, k_p = jax.random.split(key)
    x = jax.random.normal(k_x, (B, F), dtype=jnp.float32)
    params = init_params(k_p, F)

    out = mlp_forward(x, params)
    jax.block_until_ready(out)

    ref = mlp_reference(x, params)
    assert out.shape == (B, 1)
    assert jnp.allclose(out, ref, atol=1e-5, rtol=1e-5)

    print("KERNEL_OK")
</pallas_src>

<mosaic_0001>
module attributes {stable_mosaic.version = 11 : i64} {
  func.func @mlp_kernel(%arg0: i32, %arg1: memref<512x8xf32, #tpu.memory_space<vmem>>, %arg2: memref<16x8xf32, #tpu.memory_space<vmem>>, %arg3: memref<16x1xf32, #tpu.memory_space<vmem>>, %arg4: memref<16x16xf32, #tpu.memory_space<vmem>>, %arg5: memref<16x1xf32, #tpu.memory_space<vmem>>, %arg6: memref<1x16xf32, #tpu.memory_space<vmem>>, %arg7: memref<1x1xf32, #tpu.memory_space<vmem>>, %arg8: memref<1x512xf32, #tpu.memory_space<vmem>>) attributes {dimension_semantics = [#tpu.dimension_semantics<parallel>], iteration_bounds = array<i64: 2>, scalar_prefetch = 0 : i64, scratch_operands = 0 : i64, tpu.core_type = #tpu.core_type<tc>, window_params = [{transform_indices = @transform_0, window_bounds = array<i64: 512, 8>}, {pipeline_mode = #tpu.pipeline_mode<synchronous>, transform_indices = @transform_1, window_bounds = array<i64: 16, 8>}, {pipeline_mode = #tpu.pipeline_mode<synchronous>, transform_indices = @transform_2, window_bounds = array<i64: 16, 1>}, {pipeline_mode = #tpu.pipeline_mode<synchronous>, transform_indices = @transform_3, window_bounds = array<i64: 16, 16>}, {pipeline_mode = #tpu.pipeline_mode<synchronous>, transform_indices = @transform_4, window_bounds = array<i64: 16, 1>}, {pipeline_mode = #tpu.pipeline_mode<synchronous>, transform_indices = @transform_5, window_bounds = array<i64: 1, 16>}, {pipeline_mode = #tpu.pipeline_mode<synchronous>, transform_indices = @transform_6, window_bounds = array<i64: 1, 1>}, {transform_indices = @transform_7, window_bounds = array<i64: 1, 512>}]} {
    %c0 = arith.constant 0 : index
    %c0_0 = arith.constant 0 : index
    %0 = vector.load %arg2[%c0, %c0_0] : memref<16x8xf32, #tpu.memory_space<vmem>>, vector<16x8xf32>
    %c0_1 = arith.constant 0 : index
    %c0_2 = arith.constant 0 : index
    %1 = vector.load %arg3[%c0_1, %c0_2] : memref<16x1xf32, #tpu.memory_space<vmem>>, vector<16x1xf32>
    %c0_3 = arith.constant 0 : index
    %c0_4 = arith.constant 0 : index
    %2 = vector.load %arg4[%c0_3, %c0_4] : memref<16x16xf32, #tpu.memory_space<vmem>>, vector<16x16xf32>
    %c0_5 = arith.constant 0 : index
    %c0_6 = arith.constant 0 : index
    %3 = vector.load %arg5[%c0_5, %c0_6] : memref<16x1xf32, #tpu.memory_space<vmem>>, vector<16x1xf32>
    %c0_7 = arith.constant 0 : index
    %c0_8 = arith.constant 0 : index
    %4 = vector.load %arg6[%c0_7, %c0_8] : memref<1x16xf32, #tpu.memory_space<vmem>>, vector<1x16xf32>
    %c0_9 = arith.constant 0 : index
    %c0_10 = arith.constant 0 : index
    %5 = vector.load %arg7[%c0_9, %c0_10] : memref<1x1xf32, #tpu.memory_space<vmem>>, vector<1x1xf32>
    %c0_11 = arith.constant 0 : index
    %c0_12 = arith.constant 0 : index
    %6 = vector.load %arg1[%c0_11, %c0_12] : memref<512x8xf32, #tpu.memory_space<vmem>>, vector<512x8xf32>
    %cst = arith.constant dense<0.000000e+00> : vector<16x512xf32>
    %7 = tpu.matmul %0, %6, %cst {dimension_numbers = #tpu.dot_dimension_numbers<[1], [1], [0], [0], [0, 0, 1, 0], [], []>} : vector<16x8xf32>, vector<512x8xf32>, vector<16x512xf32> -> vector<16x512xf32>
    %8 = vector.broadcast %1 : vector<16x1xf32> to vector<16x512xf32>
    %9 = arith.addf %7, %8 : vector<16x512xf32>
    %10 = math.tanh %9 : vector<16x512xf32>
    %cst_13 = arith.constant dense<0.000000e+00> : vector<16x512xf32>
    %11 = tpu.matmul %2, %10, %cst_13 {dimension_numbers = #tpu.dot_dimension_numbers<[1], [0], [0], [1], [0, 0, 1, 1], [], []>} : vector<16x16xf32>, vector<16x512xf32>, vector<16x512xf32> -> vector<16x512xf32>
    %12 = vector.broadcast %3 : vector<16x1xf32> to vector<16x512xf32>
    %13 = arith.addf %11, %12 : vector<16x512xf32>
    %cst_14 = arith.constant 0.000000e+00 : f32
    %14 = vector.broadcast %cst_14 : f32 to vector<16x512xf32>
    %15 = arith.maximumf %13, %14 : vector<16x512xf32>
    %cst_15 = arith.constant dense<0.000000e+00> : vector<1x512xf32>
    %16 = tpu.matmul %4, %15, %cst_15 {dimension_numbers = #tpu.dot_dimension_numbers<[1], [0], [0], [1], [0, 0, 1, 1], [], []>} : vector<1x16xf32>, vector<16x512xf32>, vector<1x512xf32> -> vector<1x512xf32>
    %17 = vector.broadcast %5 : vector<1x1xf32> to vector<1x512xf32>
    %18 = arith.addf %16, %17 : vector<1x512xf32>
    %cst_16 = arith.constant 5.000000e-01 : f32
    %19 = vector.broadcast %cst_16 : f32 to vector<1x512xf32>
    %20 = arith.mulf %19, %18 : vector<1x512xf32>
    %21 = math.tanh %20 : vector<1x512xf32>
    %cst_17 = arith.constant 5.000000e-01 : f32
    %22 = vector.broadcast %cst_17 : f32 to vector<1x512xf32>
    %23 = arith.mulf %22, %21 : vector<1x512xf32>
    %cst_18 = arith.constant 5.000000e-01 : f32
    %24 = vector.broadcast %cst_18 : f32 to vector<1x512xf32>
    %25 = arith.addf %23, %24 : vector<1x512xf32>
    %c0_19 = arith.constant 0 : index
    %c0_20 = arith.constant 0 : index
    %26 = vector.load %arg8[%c0_19, %c0_20] : memref<1x512xf32, #tpu.memory_space<vmem>>, vector<1x512xf32>
    tpu.vector_store %arg8[%c0_19, %c0_20], %25 {strides = array<i32>} : memref<1x512xf32, #tpu.memory_space<vmem>>, vector<1x512xf32>,
    return
  }
  func.func @transform_0(%arg0: i32) -> (i32, i32) {
    %c0_i32 = arith.constant 0 : i32
    %c0_i32_0 = arith.constant 0 : i32
    return %arg0, %c0_i32 : i32, i32
  }
  func.func @transform_1(%arg0: i32) -> (i32, i32) {
    %c0_i32 = arith.constant 0 : i32
    %c0_i32_0 = arith.constant 0 : i32
    %c0_i32_1 = arith.constant 0 : i32
    return %c0_i32, %c0_i32_0 : i32, i32
  }
  func.func @transform_2(%arg0: i32) -> (i32, i32) {
    %c0_i32 = arith.constant 0 : i32
    %c0_i32_0 = arith.constant 0 : i32
    %c0_i32_1 = arith.constant 0 : i32
    return %c0_i32, %c0_i32_0 : i32, i32
  }
  func.func @transform_3(%arg0: i32) -> (i32, i32) {
    %c0_i32 = arith.constant 0 : i32
    %c0_i32_0 = arith.constant 0 : i32
    %c0_i32_1 = arith.constant 0 : i32
    return %c0_i32, %c0_i32_0 : i32, i32
  }
  func.func @transform_4(%arg0: i32) -> (i32, i32) {
    %c0_i32 = arith.constant 0 : i32
    %c0_i32_0 = arith.constant 0 : i32
    %c0_i32_1 = arith.constant 0 : i32
    return %c0_i32, %c0_i32_0 : i32, i32
  }
  func.func @transform_5(%arg0: i32) -> (i32, i32) {
    %c0_i32 = arith.constant 0 : i32
    %c0_i32_0 = arith.constant 0 : i32
    %c0_i32_1 = arith.constant 0 : i32
    return %c0_i32, %c0_i32_0 : i32, i32
  }
  func.func @transform_6(%arg0: i32) -> (i32, i32) {
    %c0_i32 = arith.constant 0 : i32
    %c0_i32_0 = arith.constant 0 : i32
    %c0_i32_1 = arith.constant 0 : i32
    return %c0_i32, %c0_i32_0 : i32, i32
  }
  func.func @transform_7(%arg0: i32) -> (i32, i32) {
    %c0_i32 = arith.constant 0 : i32
    %c0_i32_0 = arith.constant 0 : i32
    return %c0_i32, %arg0 : i32, i32
  }
}

</mosaic_0001>

<llo_original>
// kernel: tpu_custom_call.1
$region0: #{tpu_custom_call.1}
  #allocation0 [shape = 'u32[]', space=smem, size = 0x4, offset = 0x4, fixed_abs, tag = 'smem constant byte address 0x4 - core index']
  #allocation1 [shape = 'u32[144,128]{1,0:T(1,128)}', space=vmem, size = 0x12000, scoped, tag = 'internal scratch']
  #allocation2 [shape = 'f32[1,1]{1,0:T(1,128)S(1)}', space=vmem, size = 0x200, scoped, tag = 'scoped memory for tpu_custom_call.1']
  %s0 = inlined_call_operand.vmem [shape: f32[1000,8], index: 0, kind: input, shape index: {}]
  %s1 = inlined_call_operand.vmem [shape: f32[16,8], index: 1, kind: input, shape index: {}]
  %s2 = inlined_call_operand.vmem [shape: f32[16,1], index: 2, kind: input, shape index: {}]
  %s3 = inlined_call_operand.vmem [shape: f32[16,16], index: 3, kind: input, shape index: {}]
  %s4 = inlined_call_operand.vmem [shape: f32[16,1], index: 4, kind: input, shape index: {}]
  %s5 = inlined_call_operand.vmem [shape: f32[1,16], index: 5, kind: input, shape index: {}]
  %s6 = inlined_call_operand.<no memory space> [shape: f32[1,1], index: 6, kind: input, shape index: {}]
  %s7 = inlined_call_operand.hbm [shape: f32[1,1000], index: 7, kind: output, shape index: {}]
  %s8 = sld [smem:[#allocation0]]
  $region61: #{tpu_custom_call.1} parent=0
    _
  %s10 = ssub.s32 1, %s8
  %s11 = scalar_select 0, %s10, %s8
  %v12 = vstv %s6
  %13 = vst [vmem:[#allocation2] sm:$0x1] %v12
  $region1: #{tpu_custom_call.1} parent=0
    #allocation3 [shape = 'u8[4096]{0}', space=vmem, size = 0x1000, scoped, tag = 'output window, operand 0']
    #allocation4 [shape = 's32[2]{0}', space=sflag, size = 0x8, scoped, tag = 'scoped memory for tpu_custom_call.1']
    %14 = vsyncpa [#allocation4], 0
    %s15 = scalar_lea.sflag [#allocation4], 1
    %16 = vsyncpa %s15, 0
    loop: start=0, step=1, limit=4
    $region2: #{tpu_custom_call.1} parent=1 // loop_pre_header
      _
    $region3: #{tpu_custom_call.1} parent=1 // loop_header
      %s18 = sphi 0, %s22
      %p19 = scmp.ge.s32.totalorder %s18, 4
      %s28 = sphi 0, %s30
      %s31 = sphi 0, %s28
      %s32 = sphi 0, %s31
      %s48 = sphi 0, %s32
      %s52 = sphi 0, %s52
      %s54 = sphi 0, %s52
      %s55 = sphi 0, %s54
      %s69 = sphi 0, %s55
      %s73 = sphi 0, %s73
      %s75 = sphi 0, %s73
      %s76 = sphi 0, %s75
      %s90 = sphi 0, %s76
      %s94 = sphi 0, %s94
      %s96 = sphi 0, %s94
      %s97 = sphi 0, %s96
      %s111 = sphi 0, %s97
      %s115 = sphi 0, %s115
      %s117 = sphi 0, %s115
      %s118 = sphi 0, %s117
      %s132 = sphi 0, %s118
      %s136 = sphi 0, %s136
      %s138 = sphi 0, %s136
      %s139 = sphi 0, %s138
      %s153 = sphi 0, %s139
      %s157 = sphi 0, %s157
      %s159 = sphi 0, %s157
      %s160 = sphi 0, %s159
      %s174 = sphi 0, %s160
      %s180 = sphi 0, %s182
      %s183 = sphi 0, %s180
      %s184 = sphi 0, %s183
      %s200 = sphi 0, %s184
    $region4: #{tpu_custom_call.1} parent=1 // loop_header_branch
      %21 = sbr.rel (%p19) target = $region8
    $region5: #{tpu_custom_call.1} parent=1 // loop_body
      %s23 = ssub.s32 %s18, 1
      %s24 = ssub.s32 %s18, 2
      %s25 = sadd.s32 %s18, 1
      %s26 = ssub.s32 %s18, %s25
      %p27 = scmp.eq.s32.totalorder %s26, 0
      %s29 = sadd.s32 %s28, 1
      %s30 = scalar_select %p27, %s28, %s29
      %p33 = pneg %p27
      %p34 = scmp.eq.s32.totalorder %s18, 1
      %p35 = por %p33, %p34
      %p36 = scmp.ne.s32.totalorder %s28, %s31
      %p37 = scmp.eq.s32.totalorder %s18, 0
      %p38 = por %p36, %p37
      %p39 = scmp.ne.s32.totalorder %s28, %s31
      %p40 = scmp.eq.s32.totalorder %s23, 1
      %p41 = por %p39, %p40
      %p42 = scmp.ne.s32.totalorder %s31, %s32
      %p43 = scmp.eq.s32.totalorder %s23, 0
      %p44 = por %p42, %p43
      %p45 = scmp.ne.s32.totalorder %s31, %s32
      %p46 = scmp.eq.s32.totalorder %s24, 1
      %p47 = por %p45, %p46
      %p49 = scmp.ne.s32.totalorder %s32, %s48
      %p50 = scmp.eq.s32.totalorder %s24, 0
      %p51 = por %p49, %p50
      %s53 = sadd.s32 %s52, 1
      %p56 = scmp.eq.s32.totalorder %s18, 1
      %p57 = scmp.ne.s32.totalorder %s52, %s54
      %p58 = scmp.eq.s32.totalorder %s18, 0
      %p59 = por %p57, %p58
      %p60 = scmp.ne.s32.totalorder %s52, %s54
      %p61 = scmp.eq.s32.totalorder %s23, 1
      %p62 = por %p60, %p61
      %p63 = scmp.ne.s32.totalorder %s54, %s55
      %p64 = scmp.eq.s32.totalorder %s23, 0
      %p65 = por %p63, %p64
      %p66 = scmp.ne.s32.totalorder %s54, %s55
      %p67 = scmp.eq.s32.totalorder %s24, 1
      %p68 = por %p66, %p67
      %p70 = scmp.ne.s32.totalorder %s55, %s69
      %p71 = scmp.eq.s32.totalorder %s24, 0
      %p72 = por %p70, %p71
      %s74 = sadd.s32 %s73, 1
      %p77 = scmp.eq.s32.totalorder %s18, 1
      %p78 = scmp.ne.s32.totalorder %s73, %s75
      %p79 = scmp.eq.s32.totalorder %s18, 0
      %p80 = por %p78, %p79
      %p81 = scmp.ne.s32.totalorder %s73, %s75
      %p82 = scmp.eq.s32.totalorder %s23, 1
      %p83 = por %p81, %p82
      %p84 = scmp.ne.s32.totalorder %s75, %s76
      %p85 = scmp.eq.s32.totalorder %s23, 0
      %p86 = por %p84, %p85
      %p87 = scmp.ne.s32.totalorder %s75, %s76
      %p88 = scmp.eq.s32.totalorder %s24, 1
      %p89 = por %p87, %p88
      %p91 = scmp.ne.s32.totalorder %s76, %s90
      %p92 = scmp.eq.s32.totalorder %s24, 0
      %p93 = por %p91, %p92
      %s95 = sadd.s32 %s94, 1
      %p98 = scmp.eq.s32.totalorder %s18, 1
      %p99 = scmp.ne.s32.totalorder %s94, %s96
      %p100 = scmp.eq.s32.totalorder %s18, 0
      %p101 = por %p99, %p100
      %p102 = scmp.ne.s32.totalorder %s94, %s96
      %p103 = scmp.eq.s32.totalorder %s23, 1
      %p104 = por %p102, %p103
      %p105 = scmp.ne.s32.totalorder %s96, %s97
      %p106 = scmp.eq.s32.totalorder %s23, 0
      %p107 = por %p105, %p106
      %p108 = scmp.ne.s32.totalorder %s96, %s97
      %p109 = scmp.eq.s32.totalorder %s24, 1
      %p110 = por %p108, %p109
      %p112 = scmp.ne.s32.totalorder %s97, %s111
      %p113 = scmp.eq.s32.totalorder %s24, 0
      %p114 = por %p112, %p113
      %s116 = sadd.s32 %s115, 1
      %p119 = scmp.eq.s32.totalorder %s18, 1
      %p120 = scmp.ne.s32.totalorder %s115, %s117
      %p121 = scmp.eq.s32.totalorder %s18, 0
      %p122 = por %p120, %p121
      %p123 = scmp.ne.s32.totalorder %s115, %s117
      %p124 = scmp.eq.s32.totalorder %s23, 1
      %p125 = por %p123, %p124
      %p126 = scmp.ne.s32.totalorder %s117, %s118
      %p127 = scmp.eq.s32.totalorder %s23, 0
      %p128 = por %p126, %p127
      %p129 = scmp.ne.s32.totalorder %s117, %s118
      %p130 = scmp.eq.s32.totalorder %s24, 1
      %p131 = por %p129, %p130
      %p133 = scmp.ne.s32.totalorder %s118, %s132
      %p134 = scmp.eq.s32.totalorder %s24, 0
      %p135 = por %p133, %p134
      %s137 = sadd.s32 %s136, 1
      %p140 = scmp.eq.s32.totalorder %s18, 1
      %p141 = scmp.ne.s32.totalorder %s136, %s138
      %p142 = scmp.eq.s32.totalorder %s18, 0
      %p143 = por %p141, %p142
      %p144 = scmp.ne.s32.totalorder %s136, %s138
      %p145 = scmp.eq.s32.totalorder %s23, 1
      %p146 = por %p144, %p145
      %p147 = scmp.ne.s32.totalorder %s138, %s139
      %p148 = scmp.eq.s32.totalorder %s23, 0
      %p149 = por %p147, %p148
      %p150 = scmp.ne.s32.totalorder %s138, %s139
      %p151 = scmp.eq.s32.totalorder %s24, 1
      %p152 = por %p150, %p151
      %p154 = scmp.ne.s32.totalorder %s139, %s153
      %p155 = scmp.eq.s32.totalorder %s24, 0
      %p156 = por %p154, %p155
      %s158 = sadd.s32 %s157, 1
      %p161 = scmp.eq.s32.totalorder %s18, 1
      %p162 = scmp.ne.s32.totalorder %s157, %s159
      %p163 = scmp.eq.s32.totalorder %s18, 0
      %p164 = por %p162, %p163
      %p165 = scmp.ne.s32.totalorder %s157, %s159
      %p166 = scmp.eq.s32.totalorder %s23, 1
      %p167 = por %p165, %p166
      %p168 = scmp.ne.s32.totalorder %s159, %s160
      %p169 = scmp.eq.s32.totalorder %s23, 0
      %p170 = por %p168, %p169
      %p171 = scmp.ne.s32.totalorder %s159, %s160
      %p172 = scmp.eq.s32.totalorder %s24, 1
      %p173 = por %p171, %p172
      %p175 = scmp.ne.s32.totalorder %s160, %s174
      %p176 = scmp.eq.s32.totalorder %s24, 0
      %p177 = por %p175, %p176
      %s178 = ssub.s32 %s18, %s25
      %p179 = scmp.eq.s32.totalorder %s178, 0
      %s181 = sadd.s32 %s180, 1
      %s182 = scalar_select %p179, %s180, %s181
      %p185 = pneg %p179
      %p186 = scmp.eq.s32.totalorder %s18, 1
      %p187 = por %p185, %p186
      %p188 = scmp.ne.s32.totalorder %s180, %s183
      %p189 = scmp.eq.s32.totalorder %s18, 0
      %p190 = por %p188, %p189
      %p191 = scmp.ne.s32.totalorder %s180, %s183
      %p192 = scmp.eq.s32.totalorder %s23, 1
      %p193 = por %p191, %p192
      %p194 = scmp.ne.s32.totalorder %s183, %s184
      %p195 = scmp.eq.s32.totalorder %s23, 0
      %p196 = por %p194, %p195
      %p197 = scmp.ne.s32.totalorder %s183, %s184
      %p198 = scmp.eq.s32.totalorder %s24, 1
      %p199 = por %p197, %p198
      %p201 = scmp.ne.s32.totalorder %s184, %s200
      %p202 = scmp.eq.s32.totalorder %s24, 0
      %p203 = por %p201, %p202
      %p204 = scmp.le.s32.totalorder 1, %s18
      %p205 = scmp.lt.s32.totalorder %s18, 3
      %p206 = pnand %p204, %p205
      %p207 = pneg %p206
      // Predicated region
      $region9: #{tpu_custom_call.1} parent=5 // pred_check
        _
      $region10: #{tpu_custom_call.1} parent=5 // pred_check_branch
        %209 = sbr.rel (%p206) target = $region12
      $region11: #{tpu_custom_call.1} parent=5 // pred_region
        %s210 = ssub.s32 %s18, 1
        // Predicated region
        $region13: #{tpu_custom_call.1} parent=11 // pred_check
          %p211 = pneg %p65
        $region14: #{tpu_custom_call.1} parent=11 // pred_check_branch
          %213 = sbr.rel (%p211) target = $region16
        $region15: #{tpu_custom_call.1} parent=11 // pred_region
          _
        $region16: #{tpu_custom_call.1} parent=11 // pred_fallthru
          _
        // Predicated region
        $region17: #{tpu_custom_call.1} parent=11 // pred_check
          %p214 = pneg %p86
        $region18: #{tpu_custom_call.1} parent=11 // pred_check_branch
          %216 = sbr.rel (%p214) target = $region20
        $region19: #{tpu_custom_call.1} parent=11 // pred_region
          _
        $region20: #{tpu_custom_call.1} parent=11 // pred_fallthru
          _
        // Predicated region
        $region21: #{tpu_custom_call.1} parent=11 // pred_check
          %p217 = pneg %p107
        $region22: #{tpu_custom_call.1} parent=11 // pred_check_branch
          %219 = sbr.rel (%p217) target = $region24
        $region23: #{tpu_custom_call.1} parent=11 // pred_region
          _
        $region24: #{tpu_custom_call.1} parent=11 // pred_fallthru
          _
        // Predicated region
        $region25: #{tpu_custom_call.1} parent=11 // pred_check
          %p220 = pneg %p128
        $region26: #{tpu_custom_call.1} parent=11 // pred_check_branch
          %222 = sbr.rel (%p220) target = $region28
        $region27: #{tpu_custom_call.1} parent=11 // pred_region
          _
        $region28: #{tpu_custom_call.1} parent=11 // pred_fallthru
          _
        // Predicated region
        $region29: #{tpu_custom_call.1} parent=11 // pred_check
          %p223 = pneg %p149
        $region30: #{tpu_custom_call.1} parent=11 // pred_check_branch
          %225 = sbr.rel (%p223) target = $region32
        $region31: #{tpu_custom_call.1} parent=11 // pred_region
          _
        $region32: #{tpu_custom_call.1} parent=11 // pred_fallthru
          _
        // Predicated region
        $region33: #{tpu_custom_call.1} parent=11 // pred_check
          %p226 = pneg %p170
        $region34: #{tpu_custom_call.1} parent=11 // pred_check_branch
          %228 = sbr.rel (%p226) target = $region36
        $region35: #{tpu_custom_call.1} parent=11 // pred_region
          _
        $region36: #{tpu_custom_call.1} parent=11 // pred_fallthru
          _
      $region12: #{tpu_custom_call.1} parent=5 // pred_fallthru
        _
      %p229 = scmp.lt.s32.totalorder %s18, 2
      // Predicated region
      $region37: #{tpu_custom_call.1} parent=5 // pred_check
        %p230 = pneg %p229
      $region38: #{tpu_custom_call.1} parent=5 // pred_check_branch
        %232 = sbr.rel (%p230) target = $region40
      $region39: #{tpu_custom_call.1} parent=5 // pred_region
        // Predicated region
        $region41: #{tpu_custom_call.1} parent=39 // pred_check
          %p233 = pneg %p38
        $region42: #{tpu_custom_call.1} parent=39 // pred_check_branch
          %235 = sbr.rel (%p233) target = $region44
        $region43: #{tpu_custom_call.1} parent=39 // pred_region
          %s236 = smul.u32 64, %s18
          %s237 = ssub.s32 125, %s236
          %p238 = scmp.lt.s32.totalorder %s237, 64
          %s239 = scalar_select %p238, %s237, 64
          %s240 = smul.u32 128, %s239
          %p241 = scmp.lt.s32.totalorder %s236, 124
          %s242 = scalar_select %p241, %s236, 124
          %s243 = smul.addr %s242, 8
          %s244 = scalar_lea.vmem %s0, %s243
          %s245 = smul.u32 64, %s18
          %s246 = ssub.s32 125, %s245
          %p247 = scmp.lt.s32.totalorder %s246, 64
          %s248 = scalar_select %p247, %s246, 64
          %s249 = smul.u32 128, %s248
        $region44: #{tpu_custom_call.1} parent=39 // pred_fallthru
          _
      $region40: #{tpu_custom_call.1} parent=5 // pred_fallthru
        _
      %p250 = scmp.le.s32.totalorder 1, %s18
      %p251 = scmp.lt.s32.totalorder %s18, 3
      %p252 = pnand %p250, %p251
      %p253 = pneg %p252
      // Predicated region
      $region45: #{tpu_custom_call.1} parent=5 // pred_check
        _
      $region46: #{tpu_custom_call.1} parent=5 // pred_check_branch
        %255 = sbr.rel (%p252) target = $region48
      $region47: #{tpu_custom_call.1} parent=5 // pred_region
        %s256 = ssub.s32 %s18, 1
        %s257 = smul.u32 64, %s23
        %s258 = ssub.s32 125, %s257
        %p259 = scmp.lt.s32.totalorder %s258, 64
        %s260 = scalar_select %p259, %s258, 64
        %s261 = smul.u32 128, %s260
        %p262 = scmp.lt.s32.totalorder %s257, 124
        %s263 = scalar_select %p262, %s257, 124
        %s264 = smul.addr %s263, 8
        %s265 = scalar_lea.vmem %s0, %s264
        %p266 = pneg %p44
        %p267 = pneg %p41
        %p268 = pneg %p65
        %p269 = pneg %p62
        %p270 = pneg %p86
        %p271 = pneg %p83
        %p272 = pneg %p107
        %p273 = pneg %p104
        %p274 = pneg %p128
        %p275 = pneg %p125
        %p276 = pneg %p149
        %p277 = pneg %p146
        %p278 = pneg %p170
        %p279 = pneg %p167
        %p280 = pneg %p196
        %p281 = pneg %p193
        %s282 = sand.u32 %s183, 1
        %s283 = scalar_lea.sflag [#allocation4], %s282
        %s284 = sand.u32 %s183, 1
        %s285 = smul.addr %s284, 4
        %s286 = scalar_lea.vmem [#allocation3], %s285
        %s287 = smul.u32 64, %s23
        %s288 = ssub.s32 125, %s287
        %p289 = scmp.lt.s32.totalorder %s288, 64
        %s290 = scalar_select %p289, %s288, 64
        %s291 = smul.u32 128, %s290
        %p292 = scmp.lt.s32.totalorder %s287, 124
        %s293 = scalar_select %p292, %s287, 124
        %s294 = smul.addr %s293, 8
        %s295 = scalar_lea.vmem %s0, %s294
        %s296 = smul.u32 64, %s23
        %s297 = ssub.s32 125, %s296
        %p298 = scmp.lt.s32.totalorder %s297, 64
        %s299 = scalar_select %p298, %s297, 64
        %s300 = smul.u32 128, %s299
        %s301 = smul.u32 4, %s23
        %v302 = vld [vmem:[%s1] sm:$0xff]
        %v303 = vld [vmem:[%s1 + $0x8] sm:$0xff]
        %v304 = vld [vmem:[%s2] sm:$0xff]
        %v305 = vld [vmem:[%s2 + $0x8] sm:$0xff]
        %v306 = vld [vmem:[%s3] sm:$0xff]
        %v307 = vld [vmem:[%s3 + $0x8] sm:$0xff]
        %v308 = vld [vmem:[%s4] sm:$0xff]
        %v309 = vld [vmem:[%s4 + $0x8] sm:$0xff]
        %v310 = vld [vmem:[%s5] sm:$0x1]
        %v311 = vld [vmem:[#allocation2] sm:$0x1]
        %v312 = vld [vmem:[%s295] sm:$0xff]
        %v313 = vld [vmem:[%s295 + $0x8] sm:$0xff]
        %v314 = vld [vmem:[%s295 + $0x10] sm:$0xff]
        %v315 = vld [vmem:[%s295 + $0x18] sm:$0xff]
        %v316 = vld [vmem:[%s295 + $0x20] sm:$0xff]
        %v317 = vld [vmem:[%s295 + $0x28] sm:$0xff]
        %v318 = vld [vmem:[%s295 + $0x30] sm:$0xff]
        %v319 = vld [vmem:[%s295 + $0x38] sm:$0xff]
        %v320 = vld [vmem:[%s295 + $0x40] sm:$0xff]
        %v321 = vld [vmem:[%s295 + $0x48] sm:$0xff]
        %v322 = vld [vmem:[%s295 + $0x50] sm:$0xff]
        %v323 = vld [vmem:[%s295 + $0x58] sm:$0xff]
        %v324 = vld [vmem:[%s295 + $0x60] sm:$0xff]
        %v325 = vld [vmem:[%s295 + $0x68] sm:$0xff]
        %v326 = vld [vmem:[%s295 + $0x70] sm:$0xff]
        %v327 = vld [vmem:[%s295 + $0x78] sm:$0xff]
        %v328 = vld [vmem:[%s295 + $0x80] sm:$0xff]
        %v329 = vld [vmem:[%s295 + $0x88] sm:$0xff]
        %v330 = vld [vmem:[%s295 + $0x90] sm:$0xff]
        %v331 = vld [vmem:[%s295 + $0x98] sm:$0xff]
        %v332 = vld [vmem:[%s295 + $0xa0] sm:$0xff]
        %v333 = vld [vmem:[%s295 + $0xa8] sm:$0xff]
        %v334 = vld [vmem:[%s295 + $0xb0] sm:$0xff]
        %v335 = vld [vmem:[%s295 + $0xb8] sm:$0xff]
        %v336 = vld [vmem:[%s295 + $0xc0] sm:$0xff]
        %v337 = vld [vmem:[%s295 + $0xc8] sm:$0xff]
        %v338 = vld [vmem:[%s295 + $0xd0] sm:$0xff]
        %v339 = vld [vmem:[%s295 + $0xd8] sm:$0xff]
        %v340 = vld [vmem:[%s295 + $0xe0] sm:$0xff]
        %v341 = vld [vmem:[%s295 + $0xe8] sm:$0xff]
        %v342 = vld [vmem:[%s295 + $0xf0] sm:$0xff]
        %v343 = vld [vmem:[%s295 + $0xf8] sm:$0xff]
        %v344 = vld [vmem:[%s295 + $0x100] sm:$0xff]
        %v345 = vld [vmem:[%s295 + $0x108] sm:$0xff]
        %v346 = vld [vmem:[%s295 + $0x110] sm:$0xff]
        %v347 = vld [vmem:[%s295 + $0x118] sm:$0xff]
        %v348 = vld [vmem:[%s295 + $0x120] sm:$0xff]
        %v349 = vld [vmem:[%s295 + $0x128] sm:$0xff]
        %v350 = vld [vmem:[%s295 + $0x130] sm:$0xff]
        %v351 = vld [vmem:[%s295 + $0x138] sm:$0xff]
        %v352 = vld [vmem:[%s295 + $0x140] sm:$0xff]
        %v353 = vld [vmem:[%s295 + $0x148] sm:$0xff]
        %v354 = vld [vmem:[%s295 + $0x150] sm:$0xff]
        %v355 = vld [vmem:[%s295 + $0x158] sm:$0xff]
        %v356 = vld [vmem:[%s295 + $0x160] sm:$0xff]
        %v357 = vld [vmem:[%s295 + $0x168] sm:$0xff]
        %v358 = vld [vmem:[%s295 + $0x170] sm:$0xff]
        %v359 = vld [vmem:[%s295 + $0x178] sm:$0xff]
        %v360 = vld [vmem:[%s295 + $0x180] sm:$0xff]
        %v361 = vld [vmem:[%s295 + $0x188] sm:$0xff]
        %v362 = vld [vmem:[%s295 + $0x190] sm:$0xff]
        %v363 = vld [vmem:[%s295 + $0x198] sm:$0xff]
        %v364 = vld [vmem:[%s295 + $0x1a0] sm:$0xff]
        %v365 = vld [vmem:[%s295 + $0x1a8] sm:$0xff]
        %v366 = vld [vmem:[%s295 + $0x1b0] sm:$0xff]
        %v367 = vld [vmem:[%s295 + $0x1b8] sm:$0xff]
        %v368 = vld [vmem:[%s295 + $0x1c0] sm:$0xff]
        %v369 = vld [vmem:[%s295 + $0x1c8] sm:$0xff]
        %v370 = vld [vmem:[%s295 + $0x1d0] sm:$0xff]
        %v371 = vld [vmem:[%s295 + $0x1d8] sm:$0xff]
        %v372 = vld [vmem:[%s295 + $0x1e0] sm:$0xff]
        %v373 = vld [vmem:[%s295 + $0x1e8] sm:$0xff]
        %v374 = vld [vmem:[%s295 + $0x1f0] sm:$0xff]
        %v375 = vld [vmem:[%s295 + $0x1f8] sm:$0xff]
        %377 = vset.pattern.permute.xlu0 0
        %378 = vperm.xlu0 %377, %v304
        %v379 = vpop.permute.xlu0 %378
        %382 = vset.pattern.permute.xlu0 0
        %383 = vperm.xlu0 %382, %v305
        %v384 = vpop.permute.xlu0 %383
        %vm386 = vcmask 64512
        %v388 = vsel %vm386, %v302, 0
        %v391 = vsel %vm386, %v303, 0
        %v394 = vsel %vm386, %v312, 0
        %v397 = vsel %vm386, %v313, 0
        %v400 = vsel %vm386, %v314, 0
        %v403 = vsel %vm386, %v315, 0
        %v406 = vsel %vm386, %v316, 0
        %v409 = vsel %vm386, %v317, 0
        %v412 = vsel %vm386, %v318, 0
        %v415 = vsel %vm386, %v319, 0
        %v418 = vsel %vm386, %v320, 0
        %v421 = vsel %vm386, %v321, 0
        %v424 = vsel %vm386, %v322, 0
        %v427 = vsel %vm386, %v323, 0
        %v430 = vsel %vm386, %v324, 0
        %v433 = vsel %vm386, %v325, 0
        %v436 = vsel %vm386, %v326, 0
        %v439 = vsel %vm386, %v327, 0
        %v442 = vsel %vm386, %v328, 0
        %v445 = vsel %vm386, %v329, 0
        %v448 = vsel %vm386, %v330, 0
        %v451 = vsel %vm386, %v331, 0
        %v454 = vsel %vm386, %v332, 0
        %v457 = vsel %vm386, %v333, 0
        %v460 = vsel %vm386, %v334, 0
        %v463 = vsel %vm386, %v335, 0
        %v466 = vsel %vm386, %v336, 0
        %v469 = vsel %vm386, %v337, 0
        %v472 = vsel %vm386, %v338, 0
        %v475 = vsel %vm386, %v339, 0
        %v478 = vsel %vm386, %v340, 0
        %v481 = vsel %vm386, %v341, 0
        %v484 = vsel %vm386, %v342, 0
        %v487 = vsel %vm386, %v343, 0
        %v490 = vsel %vm386, %v344, 0
        %v493 = vsel %vm386, %v345, 0
        %v496 = vsel %vm386, %v346, 0
        %v499 = vsel %vm386, %v347, 0
        %v502 = vsel %vm386, %v348, 0
        %v505 = vsel %vm386, %v349, 0
        %v508 = vsel %vm386, %v350, 0
        %v511 = vsel %vm386, %v351, 0
        %v514 = vsel %vm386, %v352, 0
        %v517 = vsel %vm386, %v353, 0
        %v520 = vsel %vm386, %v354, 0
        %v523 = vsel %vm386, %v355, 0
        %v526 = vsel %vm386, %v356, 0
        %v529 = vsel %vm386, %v357, 0
        %v532 = vsel %vm386, %v358, 0
        %v535 = vsel %vm386, %v359, 0
        %v538 = vsel %vm386, %v360, 0
        %v541 = vsel %vm386, %v361, 0
        %v544 = vsel %vm386, %v362, 0
        %v547 = vsel %vm386, %v363, 0
        %v550 = vsel %vm386, %v364, 0
        %v553 = vsel %vm386, %v365, 0
        %v556 = vsel %vm386, %v366, 0
        %v559 = vsel %vm386, %v367, 0
        %v562 = vsel %vm386, %v368, 0
        %v565 = vsel %vm386, %v369, 0
        %v568 = vsel %vm386, %v370, 0
        %v571 = vsel %vm386, %v371, 0
        %v574 = vsel %vm386, %v372, 0
        %v577 = vsel %vm386, %v373, 0
        %v580 = vsel %vm386, %v374, 0
        %v583 = vsel %vm386, %v375, 0
        %585 = vmatprep.subr.mxu0 0.0
        %586 = vmatpush1.xpose.msra.mxu0 %v394
        %587 = vmatprep.subr.mxu0 0.0
        %588 = vmatpush1.xpose.msra.mxu0 %v397
        %589 = vmatprep.subr.mxu0 0.0
        %590 = vmatpush1.xpose.msra.mxu0 %v400
        %591 = vmatprep.subr.mxu0 0.0
        %592 = vmatpush1.xpose.msra.mxu0 %v403
        %593 = vmatprep.subr.mxu0 0.0
        %594 = vmatpush1.xpose.msra.mxu0 %v406
        %595 = vmatprep.subr.mxu0 0.0
        %596 = vmatpush1.xpose.msra.mxu0 %v409
        %597 = vmatprep.subr.mxu0 0.0
        %598 = vmatpush1.xpose.msra.mxu0 %v412
        %599 = vmatprep.subr.mxu0 0.0
        %600 = vmatpush1.xpose.msra.mxu0 %v415
        %601 = vmatprep.subr.mxu0 0.0
        %602 = vmatpush1.xpose.msra.mxu0 %v418
        %603 = vmatprep.subr.mxu0 0.0
        %604 = vmatpush1.xpose.msra.mxu0 %v421
        %605 = vmatprep.subr.mxu0 0.0
        %606 = vmatpush1.xpose.msra.mxu0 %v424
        %607 = vmatprep.subr.mxu0 0.0
        %608 = vmatpush1.xpose.msra.mxu0 %v427
        %609 = vmatprep.subr.mxu0 0.0
        %610 = vmatpush1.xpose.msra.mxu0 %v430
        %611 = vmatprep.subr.mxu0 0.0
        %612 = vmatpush1.xpose.msra.mxu0 %v433
        %613 = vmatprep.subr.mxu0 0.0
        %614 = vmatpush1.xpose.msra.mxu0 %v436
        %615 = vmatprep.subr.mxu0 0.0
        %616 = vmatpush1.xpose.msra.mxu0 %v439
        %617 = vmatprep.subr.mxu0 0.0
        %618 = vmatpush1.xpose.msra.mxu0 %v442
        %619 = vmatprep.subr.mxu0 0.0
        %620 = vmatpush1.xpose.msra.mxu0 %v445
        %621 = vmatprep.subr.mxu0 0.0
        %622 = vmatpush1.xpose.msra.mxu0 %v448
        %623 = vmatprep.subr.mxu0 0.0
        %624 = vmatpush1.xpose.msra.mxu0 %v451
        %625 = vmatprep.subr.mxu0 0.0
        %626 = vmatpush1.xpose.msra.mxu0 %v454
        %627 = vmatprep.subr.mxu0 0.0
        %628 = vmatpush1.xpose.msra.mxu0 %v457
        %629 = vmatprep.subr.mxu0 0.0
        %630 = vmatpush1.xpose.msra.mxu0 %v460
        %631 = vmatprep.subr.mxu0 0.0
        %632 = vmatpush1.xpose.msra.mxu0 %v463
        %633 = vmatprep.subr.mxu0 0.0
        %634 = vmatpush1.xpose.msra.mxu0 %v466
        %635 = vmatprep.subr.mxu0 0.0
        %636 = vmatpush1.xpose.msra.mxu0 %v469
        %637 = vmatprep.subr.mxu0 0.0
        %638 = vmatpush1.xpose.msra.mxu0 %v472
        %639 = vmatprep.subr.mxu0 0.0
        %640 = vmatpush1.xpose.msra.mxu0 %v475
        %641 = vmatprep.subr.mxu0 0.0
        %642 = vmatpush1.xpose.msra.mxu0 %v478
        %643 = vmatprep.subr.mxu0 0.0
        %644 = vmatpush1.xpose.msra.mxu0 %v481
        %645 = vmatprep.subr.mxu0 0.0
        %646 = vmatpush1.xpose.msra.mxu0 %v484
        %647 = vmatprep.subr.mxu0 0.0
        %648 = vmatpush1.xpose.msra.mxu0 %v487
        %649 = vmatprep.mubr.f32.mxu0 0.0
        %650 = vmatmul.mubr.f32.gmra.mrb[0].mxu0 %v388
        %v651 = vpop.f32.mrb[0].mxu0
        %v652 = vadd.f32 %v379, %v651
        %v653 = vpop.f32.mrb[0].mxu0
        %v654 = vadd.f32 %v379, %v653
        %655 = vmatprep.mubr.f32.mxu0 0.0
        %656 = vmatmul.mubr.f32.gmra.mrb[0].mxu0 %v391
        %v657 = vpop.f32.mrb[0].mxu0
        %v658 = vadd.f32 %v384, %v657
        %v659 = vpop.f32.mrb[0].mxu0
        %v660 = vadd.f32 %v384, %v659
        %661 = vdwg.mxu0
        %662 = vmatprep.subr.mxu0 0.0
        %663 = vmatpush1.xpose.msra.mxu0 %v490
        %664 = vmatprep.subr.mxu0 0.0
        %665 = vmatpush1.xpose.msra.mxu0 %v493
        %666 = vmatprep.subr.mxu0 0.0
        %667 = vmatpush1.xpose.msra.mxu0 %v496
        %668 = vmatprep.subr.mxu0 0.0
        %669 = vmatpush1.xpose.msra.mxu0 %v499
        %670 = vmatprep.subr.mxu0 0.0
        %671 = vmatpush1.xpose.msra.mxu0 %v502
        %672 = vmatprep.subr.mxu0 0.0
        %673 = vmatpush1.xpose.msra.mxu0 %v505
        %674 = vmatprep.subr.mxu0 0.0
        %675 = vmatpush1.xpose.msra.mxu0 %v508
        %676 = vmatprep.subr.mxu0 0.0
        %677 = vmatpush1.xpose.msra.mxu0 %v511
        %678 = vmatprep.subr.mxu0 0.0
        %679 = vmatpush1.xpose.msra.mxu0 %v514
        %680 = vmatprep.subr.mxu0 0.0
        %681 = vmatpush1.xpose.msra.mxu0 %v517
        %682 = vmatprep.subr.mxu0 0.0
        %683 = vmatpush1.xpose.msra.mxu0 %v520
        %684 = vmatprep.subr.mxu0 0.0
        %685 = vmatpush1.xpose.msra.mxu0 %v523
        %686 = vmatprep.subr.mxu0 0.0
        %687 = vmatpush1.xpose.msra.mxu0 %v526
        %688 = vmatprep.subr.mxu0 0.0
        %689 = vmatpush1.xpose.msra.mxu0 %v529
        %690 = vmatprep.subr.mxu0 0.0
        %691 = vmatpush1.xpose.msra.mxu0 %v532
        %692 = vmatprep.subr.mxu0 0.0
        %693 = vmatpush1.xpose.msra.mxu0 %v535
        %694 = vmatprep.subr.mxu0 0.0
        %695 = vmatpush1.xpose.msra.mxu0 %v538
        %696 = vmatprep.subr.mxu0 0.0
        %697 = vmatpush1.xpose.msra.mxu0 %v541
        %698 = vmatprep.subr.mxu0 0.0
        %699 = vmatpush1.xpose.msra.mxu0 %v544
        %700 = vmatprep.subr.mxu0 0.0
        %701 = vmatpush1.xpose.msra.mxu0 %v547
        %702 = vmatprep.subr.mxu0 0.0
        %703 = vmatpush1.xpose.msra.mxu0 %v550
        %704 = vmatprep.subr.mxu0 0.0
        %705 = vmatpush1.xpose.msra.mxu0 %v553
        %706 = vmatprep.subr.mxu0 0.0
        %707 = vmatpush1.xpose.msra.mxu0 %v556
        %708 = vmatprep.subr.mxu0 0.0
        %709 = vmatpush1.xpose.msra.mxu0 %v559
        %710 = vmatprep.subr.mxu0 0.0
        %711 = vmatpush1.xpose.msra.mxu0 %v562
        %712 = vmatprep.subr.mxu0 0.0
        %713 = vmatpush1.xpose.msra.mxu0 %v565
        %714 = vmatprep.subr.mxu0 0.0
        %715 = vmatpush1.xpose.msra.mxu0 %v568
        %716 = vmatprep.subr.mxu0 0.0
        %717 = vmatpush1.xpose.msra.mxu0 %v571
        %718 = vmatprep.subr.mxu0 0.0
        %719 = vmatpush1.xpose.msra.mxu0 %v574
        %720 = vmatprep.subr.mxu0 0.0
        %721 = vmatpush1.xpose.msra.mxu0 %v577
        %722 = vmatprep.subr.mxu0 0.0
        %723 = vmatpush1.xpose.msra.mxu0 %v580
        %724 = vmatprep.subr.mxu0 0.0
        %725 = vmatpush1.xpose.msra.mxu0 %v583
        %726 = vmatprep.mubr.f32.mxu0 0.0
        %727 = vmatmul.mubr.f32.gmra.mrb[0].mxu0 %v388
        %v728 = vpop.f32.mrb[0].mxu0
        %v729 = vadd.f32 %v379, %v728
        %v730 = vpop.f32.mrb[0].mxu0
        %v731 = vadd.f32 %v379, %v730
        %732 = vmatprep.mubr.f32.mxu0 0.0
        %733 = vmatmul.mubr.f32.gmra.mrb[0].mxu0 %v391
        %v734 = vpop.f32.mrb[0].mxu0
        %v735 = vadd.f32 %v384, %v734
        %v736 = vpop.f32.mrb[0].mxu0
        %v737 = vadd.f32 %v384, %v736
        %738 = vdwg.mxu0
        %v739 = vtanh.pop %v652
        %v740 = vtanh.pop %v654
        %v741 = vtanh.pop %v729
        %v742 = vtanh.pop %v731
        %v743 = vtanh.pop %v658
        %v744 = vtanh.pop %v660
        %v745 = vtanh.pop %v735
        %v746 = vtanh.pop %v737
        %748 = vset.pattern.permute.xlu0 0
        %749 = vperm.xlu0 %748, %v308
        %v750 = vpop.permute.xlu0 %749
        %753 = vset.pattern.permute.xlu0 0
        %754 = vperm.xlu0 %753, %v309
        %v755 = vpop.permute.xlu0 %754
        %vm757 = vcmask 130048
        %v759 = vsel %vm757, %v306, 0
        %v762 = vsel %vm757, %v307, 0
        %764 = vmatprep.subr.mxu0 %v740
        %765 = vmatpush1.msra.mxu0 %v739
        %766 = vmatprep.subr.mxu0 %v744
        %767 = vmatpush1.msra.mxu0 %v743
        %768 = vmatprep.subr.mxu0 0.0
        %769 = vmatpush1.msra.mxu0 0.0
        %770 = vmatprep.subr.mxu0 0.0
        %771 = vmatpush1.msra.mxu0 0.0
        %772 = vmatprep.subr.mxu0 0.0
        %773 = vmatpush1.msra.mxu0 0.0
        %774 = vmatprep.subr.mxu0 0.0
        %775 = vmatpush1.msra.mxu0 0.0
        %776 = vmatprep.subr.mxu0 0.0
        %777 = vmatpush1.msra.mxu0 0.0
        %778 = vmatprep.subr.mxu0 0.0
        %779 = vmatpush1.msra.mxu0 0.0
        %780 = vmatprep.subr.mxu0 0.0
        %781 = vmatpush1.msra.mxu0 0.0
        %782 = vmatprep.subr.mxu0 0.0
        %783 = vmatpush1.msra.mxu0 0.0
        %784 = vmatprep.subr.mxu0 0.0
        %785 = vmatpush1.msra.mxu0 0.0
        %786 = vmatprep.subr.mxu0 0.0
        %787 = vmatpush1.msra.mxu0 0.0
        %788 = vmatprep.subr.mxu0 0.0
        %789 = vmatpush1.msra.mxu0 0.0
        %790 = vmatprep.subr.mxu0 0.0
        %791 = vmatpush1.msra.mxu0 0.0
        %792 = vmatprep.subr.mxu0 0.0
        %793 = vmatpush1.msra.mxu0 0.0
        %794 = vmatprep.subr.mxu0 0.0
        %795 = vmatpush1.msra.mxu0 0.0
        %796 = vmatprep.subr.mxu0 0.0
        %797 = vmatpush1.msra.mxu0 0.0
        %798 = vmatprep.subr.mxu0 0.0
        %799 = vmatpush1.msra.mxu0 0.0
        %800 = vmatprep.subr.mxu0 0.0
        %801 = vmatpush1.msra.mxu0 0.0
        %802 = vmatprep.subr.mxu0 0.0
        %803 = vmatpush1.msra.mxu0 0.0
        %804 = vmatprep.subr.mxu0 0.0
        %805 = vmatpush1.msra.mxu0 0.0
        %806 = vmatprep.subr.mxu0 0.0
        %807 = vmatpush1.msra.mxu0 0.0
        %808 = vmatprep.subr.mxu0 0.0
        %809 = vmatpush1.msra.mxu0 0.0
        %810 = vmatprep.subr.mxu0 0.0
        %811 = vmatpush1.msra.mxu0 0.0
        %812 = vmatprep.subr.mxu0 0.0
        %813 = vmatpush1.msra.mxu0 0.0
        %814 = vmatprep.subr.mxu0 0.0
        %815 = vmatpush1.msra.mxu0 0.0
        %816 = vmatprep.subr.mxu0 0.0
        %817 = vmatpush1.msra.mxu0 0.0
        %818 = vmatprep.subr.mxu0 0.0
        %819 = vmatpush1.msra.mxu0 0.0
        %820 = vmatprep.subr.mxu0 0.0
        %821 = vmatpush1.msra.mxu0 0.0
        %822 = vmatprep.subr.mxu0 0.0
        %823 = vmatpush1.msra.mxu0 0.0
        %824 = vmatprep.subr.mxu0 0.0
        %825 = vmatpush1.msra.mxu0 0.0
        %826 = vmatprep.subr.mxu0 0.0
        %827 = vmatpush1.msra.mxu0 0.0
        %828 = vmatprep.mubr.f32.mxu0 0.0
        %829 = vmatmul.mubr.f32.gmra.mrb[0].mxu0 %v759
        %v830 = vpop.f32.mrb[0].mxu0
        %v831 = vadd.f32 %v750, %v830
        %v832 = vpop.f32.mrb[0].mxu0
        %v833 = vadd.f32 %v750, %v832
        %834 = vmatprep.mubr.f32.mxu0 0.0
        %835 = vmatmul.mubr.f32.gmra.mrb[0].mxu0 %v762
        %v836 = vpop.f32.mrb[0].mxu0
        %v837 = vadd.f32 %v755, %v836
        %v838 = vpop.f32.mrb[0].mxu0
        %v839 = vadd.f32 %v755, %v838
        %840 = vdwg.mxu0
        %841 = vmatprep.subr.mxu0 %v742
        %842 = vmatpush1.msra.mxu0 %v741
        %843 = vmatprep.subr.mxu0 %v746
        %844 = vmatpush1.msra.mxu0 %v745
        %845 = vmatprep.subr.mxu0 0.0
        %846 = vmatpush1.msra.mxu0 0.0
        %847 = vmatprep.subr.mxu0 0.0
        %848 = vmatpush1.msra.mxu0 0.0
        %849 = vmatprep.subr.mxu0 0.0
        %850 = vmatpush1.msra.mxu0 0.0
        %851 = vmatprep.subr.mxu0 0.0
        %852 = vmatpush1.msra.mxu0 0.0
        %853 = vmatprep.subr.mxu0 0.0
        %854 = vmatpush1.msra.mxu0 0.0
        %855 = vmatprep.subr.mxu0 0.0
        %856 = vmatpush1.msra.mxu0 0.0
        %857 = vmatprep.subr.mxu0 0.0
        %858 = vmatpush1.msra.mxu0 0.0
        %859 = vmatprep.subr.mxu0 0.0
        %860 = vmatpush1.msra.mxu0 0.0
        %861 = vmatprep.subr.mxu0 0.0
        %862 = vmatpush1.msra.mxu0 0.0
        %863 = vmatprep.subr.mxu0 0.0
        %864 = vmatpush1.msra.mxu0 0.0
        %865 = vmatprep.subr.mxu0 0.0
        %866 = vmatpush1.msra.mxu0 0.0
        %867 = vmatprep.subr.mxu0 0.0
        %868 = vmatpush1.msra.mxu0 0.0
        %869 = vmatprep.subr.mxu0 0.0
        %870 = vmatpush1.msra.mxu0 0.0
        %871 = vmatprep.subr.mxu0 0.0
        %872 = vmatpush1.msra.mxu0 0.0
        %873 = vmatprep.subr.mxu0 0.0
        %874 = vmatpush1.msra.mxu0 0.0
        %875 = vmatprep.subr.mxu0 0.0
        %876 = vmatpush1.msra.mxu0 0.0
        %877 = vmatprep.subr.mxu0 0.0
        %878 = vmatpush1.msra.mxu0 0.0
        %879 = vmatprep.subr.mxu0 0.0
        %880 = vmatpush1.msra.mxu0 0.0
        %881 = vmatprep.subr.mxu0 0.0
        %882 = vmatpush1.msra.mxu0 0.0
        %883 = vmatprep.subr.mxu0 0.0
        %884 = vmatpush1.msra.mxu0 0.0
        %885 = vmatprep.subr.mxu0 0.0
        %886 = vmatpush1.msra.mxu0 0.0
        %887 = vmatprep.subr.mxu0 0.0
        %888 = vmatpush1.msra.mxu0 0.0
        %889 = vmatprep.subr.mxu0 0.0
        %890 = vmatpush1.msra.mxu0 0.0
        %891 = vmatprep.subr.mxu0 0.0
        %892 = vmatpush1.msra.mxu0 0.0
        %893 = vmatprep.subr.mxu0 0.0
        %894 = vmatpush1.msra.mxu0 0.0
        %895 = vmatprep.subr.mxu0 0.0
        %896 = vmatpush1.msra.mxu0 0.0
        %897 = vmatprep.subr.mxu0 0.0
        %898 = vmatpush1.msra.mxu0 0.0
        %899 = vmatprep.subr.mxu0 0.0
        %900 = vmatpush1.msra.mxu0 0.0
        %901 = vmatprep.subr.mxu0 0.0
        %902 = vmatpush1.msra.mxu0 0.0
        %903 = vmatprep.subr.mxu0 0.0
        %904 = vmatpush1.msra.mxu0 0.0
        %905 = vmatprep.mubr.f32.mxu0 0.0
        %906 = vmatmul.mubr.f32.gmra.mrb[0].mxu0 %v759
        %v907 = vpop.f32.mrb[0].mxu0
        %v908 = vadd.f32 %v750, %v907
        %v909 = vpop.f32.mrb[0].mxu0
        %v910 = vadd.f32 %v750, %v909
        %911 = vmatprep.mubr.f32.mxu0 0.0
        %912 = vmatmul.mubr.f32.gmra.mrb[0].mxu0 %v762
        %v913 = vpop.f32.mrb[0].mxu0
        %v914 = vadd.f32 %v755, %v913
        %v915 = vpop.f32.mrb[0].mxu0
        %v916 = vadd.f32 %v755, %v915
        %917 = vdwg.mxu0
        %v918 = vmax.f32 %v831, 0.0
        %v919 = vmax.f32 %v833, 0.0
        %v920 = vmax.f32 %v908, 0.0
        %v921 = vmax.f32 %v910, 0.0
        %v922 = vmax.f32 %v837, 0.0
        %v923 = vmax.f32 %v839, 0.0
        %v924 = vmax.f32 %v914, 0.0
        %v925 = vmax.f32 %v916, 0.0
        %927 = vset.pattern.permute.xlu0 0
        %928 = vperm.xlu0 %927, %v311
        %v929 = vpop.permute.xlu0 %928
        %v931 = vlaneseq
        %v932 = vshrl.u32 %v931, 7
        %v933 = vsub.s32 0, %v932
        %v934 = vrot.slane %v929, %v933
        %v936 = vsel %vm757, %v310, 0
        %938 = vmatprep.subr.mxu0 %v919
        %939 = vmatpush1.msra.mxu0 %v918
        %940 = vmatprep.subr.mxu0 %v923
        %941 = vmatpush1.msra.mxu0 %v922
        %942 = vmatprep.subr.mxu0 0.0
        %943 = vmatpush1.msra.mxu0 0.0
        %944 = vmatprep.subr.mxu0 0.0
        %945 = vmatpush1.msra.mxu0 0.0
        %946 = vmatprep.subr.mxu0 0.0
        %947 = vmatpush1.msra.mxu0 0.0
        %948 = vmatprep.subr.mxu0 0.0
        %949 = vmatpush1.msra.mxu0 0.0
        %950 = vmatprep.subr.mxu0 0.0
        %951 = vmatpush1.msra.mxu0 0.0
        %952 = vmatprep.subr.mxu0 0.0
        %953 = vmatpush1.msra.mxu0 0.0
        %954 = vmatprep.subr.mxu0 0.0
        %955 = vmatpush1.msra.mxu0 0.0
        %956 = vmatprep.subr.mxu0 0.0
        %957 = vmatpush1.msra.mxu0 0.0
        %958 = vmatprep.subr.mxu0 0.0
        %959 = vmatpush1.msra.mxu0 0.0
        %960 = vmatprep.subr.mxu0 0.0
        %961 = vmatpush1.msra.mxu0 0.0
        %962 = vmatprep.subr.mxu0 0.0
        %963 = vmatpush1.msra.mxu0 0.0
        %964 = vmatprep.subr.mxu0 0.0
        %965 = vmatpush1.msra.mxu0 0.0
        %966 = vmatprep.subr.mxu0 0.0
        %967 = vmatpush1.msra.mxu0 0.0
        %968 = vmatprep.subr.mxu0 0.0
        %969 = vmatpush1.msra.mxu0 0.0
        %970 = vmatprep.subr.mxu0 0.0
        %971 = vmatpush1.msra.mxu0 0.0
        %972 = vmatprep.subr.mxu0 0.0
        %973 = vmatpush1.msra.mxu0 0.0
        %974 = vmatprep.subr.mxu0 0.0
        %975 = vmatpush1.msra.mxu0 0.0
        %976 = vmatprep.subr.mxu0 0.0
        %977 = vmatpush1.msra.mxu0 0.0
        %978 = vmatprep.subr.mxu0 0.0
        %979 = vmatpush1.msra.mxu0 0.0
        %980 = vmatprep.subr.mxu0 0.0
        %981 = vmatpush1.msra.mxu0 0.0
        %982 = vmatprep.subr.mxu0 0.0
        %983 = vmatpush1.msra.mxu0 0.0
        %984 = vmatprep.subr.mxu0 0.0
        %985 = vmatpush1.msra.mxu0 0.0
        %986 = vmatprep.subr.mxu0 0.0
        %987 = vmatpush1.msra.mxu0 0.0
        %988 = vmatprep.subr.mxu0 0.0
        %989 = vmatpush1.msra.mxu0 0.0
        %990 = vmatprep.subr.mxu0 0.0
        %991 = vmatpush1.msra.mxu0 0.0
        %992 = vmatprep.subr.mxu0 0.0
        %993 = vmatpush1.msra.mxu0 0.0
        %994 = vmatprep.subr.mxu0 0.0
        %995 = vmatpush1.msra.mxu0 0.0
        %996 = vmatprep.subr.mxu0 0.0
        %997 = vmatpush1.msra.mxu0 0.0
        %998 = vmatprep.subr.mxu0 0.0
        %999 = vmatpush1.msra.mxu0 0.0
        %1000 = vmatprep.subr.mxu0 0.0
        %1001 = vmatpush1.msra.mxu0 0.0
        %1002 = vmatprep.mubr.f32.mxu0 0.0
        %1003 = vmatmul.mubr.f32.gmra.mrb[0].mxu0 %v936
        %v1004 = vpop.f32.mrb[0].mxu0
        %v1005 = vadd.f32 %v934, %v1004
        %v1006 = vpop.f32.mrb[0].mxu0
        %v1007 = vadd.f32 %v934, %v1006
        %1008 = vdwg.mxu0
        %1009 = vmatprep.subr.mxu0 %v921
        %1010 = vmatpush1.msra.mxu0 %v920
        %1011 = vmatprep.subr.mxu0 %v925
        %1012 = vmatpush1.msra.mxu0 %v924
        %1013 = vmatprep.subr.mxu0 0.0
        %1014 = vmatpush1.msra.mxu0 0.0
        %1015 = vmatprep.subr.mxu0 0.0
        %1016 = vmatpush1.msra.mxu0 0.0
        %1017 = vmatprep.subr.mxu0 0.0
        %1018 = vmatpush1.msra.mxu0 0.0
        %1019 = vmatprep.subr.mxu0 0.0
        %1020 = vmatpush1.msra.mxu0 0.0
        %1021 = vmatprep.subr.mxu0 0.0
        %1022 = vmatpush1.msra.mxu0 0.0
        %1023 = vmatprep.subr.mxu0 0.0
        %1024 = vmatpush1.msra.mxu0 0.0
        %1025 = vmatprep.subr.mxu0 0.0
        %1026 = vmatpush1.msra.mxu0 0.0
        %1027 = vmatprep.subr.mxu0 0.0
        %1028 = vmatpush1.msra.mxu0 0.0
        %1029 = vmatprep.subr.mxu0 0.0
        %1030 = vmatpush1.msra.mxu0 0.0
        %1031 = vmatprep.subr.mxu0 0.0
        %1032 = vmatpush1.msra.mxu0 0.0
        %1033 = vmatprep.subr.mxu0 0.0
        %1034 = vmatpush1.msra.mxu0 0.0
        %1035 = vmatprep.subr.mxu0 0.0
        %1036 = vmatpush1.msra.mxu0 0.0
        %1037 = vmatprep.subr.mxu0 0.0
        %1038 = vmatpush1.msra.mxu0 0.0
        %1039 = vmatprep.subr.mxu0 0.0
        %1040 = vmatpush1.msra.mxu0 0.0
        %1041 = vmatprep.subr.mxu0 0.0
        %1042 = vmatpush1.msra.mxu0 0.0
        %1043 = vmatprep.subr.mxu0 0.0
        %1044 = vmatpush1.msra.mxu0 0.0
        %1045 = vmatprep.subr.mxu0 0.0
        %1046 = vmatpush1.msra.mxu0 0.0
        %1047 = vmatprep.subr.mxu0 0.0
        %1048 = vmatpush1.msra.mxu0 0.0
        %1049 = vmatprep.subr.mxu0 0.0
        %1050 = vmatpush1.msra.mxu0 0.0
        %1051 = vmatprep.subr.mxu0 0.0
        %1052 = vmatpush1.msra.mxu0 0.0
        %1053 = vmatprep.subr.mxu0 0.0
        %1054 = vmatpush1.msra.mxu0 0.0
        %1055 = vmatprep.subr.mxu0 0.0
        %1056 = vmatpush1.msra.mxu0 0.0
        %1057 = vmatprep.subr.mxu0 0.0
        %1058 = vmatpush1.msra.mxu0 0.0
        %1059 = vmatprep.subr.mxu0 0.0
        %1060 = vmatpush1.msra.mxu0 0.0
        %1061 = vmatprep.subr.mxu0 0.0
        %1062 = vmatpush1.msra.mxu0 0.0
        %1063 = vmatprep.subr.mxu0 0.0
        %1064 = vmatpush1.msra.mxu0 0.0
        %1065 = vmatprep.subr.mxu0 0.0
        %1066 = vmatpush1.msra.mxu0 0.0
        %1067 = vmatprep.subr.mxu0 0.0
        %1068 = vmatpush1.msra.mxu0 0.0
        %1069 = vmatprep.subr.mxu0 0.0
        %1070 = vmatpush1.msra.mxu0 0.0
        %1071 = vmatprep.subr.mxu0 0.0
        %1072 = vmatpush1.msra.mxu0 0.0
        %1073 = vmatprep.mubr.f32.mxu0 0.0
        %1074 = vmatmul.mubr.f32.gmra.mrb[0].mxu0 %v936
        %v1075 = vpop.f32.mrb[0].mxu0
        %v1076 = vadd.f32 %v934, %v1075
        %v1077 = vpop.f32.mrb[0].mxu0
        %v1078 = vadd.f32 %v934, %v1077
        %1079 = vdwg.mxu0
        %v1080 = vmul.f32 %v1005, 0.5
        %v1081 = vmul.f32 %v1007, 0.5
        %v1082 = vmul.f32 %v1076, 0.5
        %v1083 = vmul.f32 %v1078, 0.5
        %v1084 = vtanh.pop %v1080
        %v1085 = vtanh.pop %v1081
        %v1086 = vtanh.pop %v1082
        %v1087 = vtanh.pop %v1083
        %v1088 = vmul.f32 %v1084, 0.5
        %v1089 = vmul.f32 %v1085, 0.5
        %v1090 = vmul.f32 %v1086, 0.5
        %v1091 = vmul.f32 %v1087, 0.5
        %v1092 = vadd.f32 %v1088, 0.5
        %v1093 = vadd.f32 %v1089, 0.5
        %v1094 = vadd.f32 %v1090, 0.5
        %v1095 = vadd.f32 %v1091, 0.5
        %v1100 = vcombine.low %v1092, %v1093
        %v1101 = vcombine.low %v1094, %v1095
        %v1103 = vunpack.c.l.s4 1966171168
        %v1104 = vunpack.c.0.s8 %v1103
        %v1105 = vlaneseq
        %v1106 = vshrl.u32 %v1105, 7
        %v1107 = vsub.s32 %v1104, %v1106
        %v1108 = vrot.slane %v1100, %v1107
        %v1110 = vunpack.c.l.s4 1966171168
        %v1111 = vunpack.c.0.s8 %v1110
        %v1112 = vlaneseq
        %v1113 = vshrl.u32 %v1112, 7
        %v1114 = vsub.s32 %v1111, %v1113
        %v1115 = vrot.slane %v1101, %v1114
        %v1116 = vcombine.low %v1108, %v1115
        %v1118 = vunpack.c.l.s4 1966171168
        %v1119 = vunpack.c.0.s8 %v1118
        %v1120 = vlaneseq
        %v1121 = vshrl.u32 %v1120, 7
        %v1122 = vsub.s32 %v1119, %v1121
        %v1123 = vrot.slane %v1116, %v1122
        %v1125 = vlaneseq
        %vm1126 = vcmp.ge.s32.totalorder %v1125, 0
        %vm1127 = vcmp.lt.s32.totalorder %v1125, 512
        %vm1128 = vmand %vm1126, %vm1127
        %1129 = vst.msk [vmem:[%s286] sm:$0xf] %vm1128, %v1123
        %s1130 = sand.u32 %s183, 1
        %s1131 = scalar_lea.sflag [#allocation4], %s1130
        %s1132 = sand.u32 %s183, 1
        %s1133 = smul.addr %s1132, 4
        %s1134 = scalar_lea.vmem [#allocation3], %s1133
        // Predicated region
        $region49: #{tpu_custom_call.1} parent=47 // pred_check
          %p1135 = pneg %p193
        $region50: #{tpu_custom_call.1} parent=47 // pred_check_branch
          %1137 = sbr.rel (%p1135) target = $region52
        $region51: #{tpu_custom_call.1} parent=47 // pred_region
          %s1138 = smul.u32 4, %s23
          %s1140 = ssub.s32 64, 64
          %1141 = vsyncadd %s1131, %s1140
          %s1142 = smul.addr %s1138, 16
          %s1143 = scalar_lea.hbm %s7, %s1142
          %s1145 = sshll.u32 %s1134, 4
          %s1146 = int_to_ptr.vmem [resolvable:$true] %s1145
          %1148 = dma.vmem_to_hbm [thread:$0]  %s1146, 64, %s1143, %s1131
        $region52: #{tpu_custom_call.1} parent=47 // pred_fallthru
          _
      $region48: #{tpu_custom_call.1} parent=5 // pred_fallthru
        _
      %p1149 = scmp.le.s32.totalorder 2, %s18
      // Predicated region
      $region53: #{tpu_custom_call.1} parent=5 // pred_check
        %p1150 = pneg %p1149
      $region54: #{tpu_custom_call.1} parent=5 // pred_check_branch
        %1152 = sbr.rel (%p1150) target = $region56
      $region55: #{tpu_custom_call.1} parent=5 // pred_region
        %s1153 = ssub.s32 %s18, 2
        // Predicated region
        $region57: #{tpu_custom_call.1} parent=55 // pred_check
          %p1154 = pneg %p199
        $region58: #{tpu_custom_call.1} parent=55 // pred_check_branch
          %1156 = sbr.rel (%p1154) target = $region60
        $region59: #{tpu_custom_call.1} parent=55 // pred_region
          %s1157 = sand.u32 %s184, 1
          %s1158 = scalar_lea.sflag [#allocation4], %s1157
          %s1159 = sand.u32 %s184, 1
          %s1160 = smul.addr %s1159, 4
          %s1161 = scalar_lea.vmem [#allocation3], %s1160
          %1162 = dma.done %s1158, 64
        $region60: #{tpu_custom_call.1} parent=55 // pred_fallthru
          _
      $region56: #{tpu_custom_call.1} parent=5 // pred_fallthru
        _
    $region6: #{tpu_custom_call.1} parent=1 // loop_footer
      %s22 = sadd.s32 1, %s18
    $region7: #{tpu_custom_call.1} parent=1 // loop_footer_branch
      %17 = sbr.rel target = $region3
    $region8: #{tpu_custom_call.1} parent=1 // loop_exit
      _
    %1163 = vsyncpa [#allocation4], 1
    %s1164 = scalar_lea.sflag [#allocation4], 1
    %1165 = vsyncpa %s1164, 1

</llo_original>
